<compile_context>
chip_gen: v6e
topology: v6e:2x2x1
jax: 0.10.0
libtpu: 0.0.40
codegen_flags: <defaults>
</compile_context>

<pallas_src>
import math

import jax
import jax.numpy as jnp
from jax.experimental import pallas as pl
from jax.experimental.pallas import tpu as pltpu


def _round_up(x, m):
    return ((x + m - 1) // m) * m


def _make_graphconv_kernel(ti, num_supports, feat, compute_dtype):
    """feat = (possibly zero-padded) per-batch-element feature width."""

    def kernel(sup_ref, x_ref, w_ref, b_ref, o_ref):
        # sup_ref: (J, TK, M)         compute_dtype
        # x_ref:   (M, TI*feat)       compute_dtype   (batch folded into lanes)
        # w_ref:   (J*feat, O_pad)    compute_dtype   (J reduction pre-fused)
        # b_ref:   (1, O_pad)         float32
        # o_ref:   (TI, TK, O_pad)
        xf = x_ref[...]                                   # (M, TI*feat)
        w = w_ref[...]                                    # (J*feat, O_pad)
        b = b_ref[...]                                    # (1, O_pad)

        # Batched first matmul: one wide MXU call per support, f32 accumulate.
        aggr = [
            jnp.dot(sup_ref[j], xf, preferred_element_type=jnp.float32)
            for j in range(num_supports)
        ]                                                 # J x (TK, TI*feat)

        # Second matmul with the J reduction fused into the contraction:
        # per batch element, concatenate the J aggregations -> (TK, J*feat)
        # and contract once over J*feat.  Each result tile is stored right
        # away, so there is no long-lived f32 accumulator to spill.
        for i in range(ti):                               # TI <= 8, static
            a_cat = jnp.concatenate(
                [a[:, i * feat:(i + 1) * feat].astype(compute_dtype)
                 for a in aggr],
                axis=-1)                                  # (TK, J*feat)
            out_i = jnp.dot(a_cat, w, preferred_element_type=jnp.float32)
            o_ref[i] = (out_i + b).astype(o_ref.dtype)    # lane-dense store

    return kernel


def graph_conv(supports, inputs, weight, bias, *,
               block_i=8, block_k=512,
               compute_dtype=jnp.bfloat16, out_dtype=None):
    """supports (J,K,M), inputs (I,M,L), weight (J,L,O), bias (O,) -> (I,K,O)."""
    J, K, M = supports.shape
    I, M2, L = inputs.shape
    assert M2 == M
    J2, L2, O = weight.shape
    assert J2 == J and L2 == L
    assert bias.shape == (O,)
    assert block_k % 8 == 0, "block_k must be a multiple of 8"
    if out_dtype is None:
        out_dtype = inputs.dtype

    # ---- Tile selection ------------------------------------------------
    if I <= block_i:
        TI = I                                   # whole batch per step (full-dim block)
    else:
        TI = max(8, (block_i // 8) * 8)          # tiled batch: multiple of 8
    I_pad = _round_up(I, TI)

    # If the batch axis is tiled, pad the per-element feature width so the
    # (M, TI*L_eff) input block keeps a 128-multiple last dim.  Padded feature
    # columns are zero and meet zero weight rows, so results are unchanged.
    if TI == I_pad:
        L_eff = L
    else:
        L_eff = _round_up(L, 128 // math.gcd(TI, 128))

    TK = K if K <= block_k else block_k
    K_pad = _round_up(K, TK)
    O_pad = _round_up(max(O, 128), 128)          # lane-dense output stores

    # ---- Per-generation VMEM budget; shrink TK to fit ~75% of capacity ---
    try:
        vmem_cap = int(pltpu.get_tpu_info().vmem_capacity_bytes)
    except Exception:                            # conservative fallback (v7x-sized)
        vmem_cap = 64 * 1024 * 1024
    vmem_limit = min(int(vmem_cap * 3 // 4), 110 * 1024 * 1024)

    c_bytes = jnp.dtype(compute_dtype).itemsize
    o_bytes = jnp.dtype(out_dtype).itemsize

    def _vmem_use(tk, ti):
        sup_b = J * tk * M * c_bytes
        x_b = M * ti * L_eff * c_bytes
        w_b = J * L_eff * O_pad * c_bytes
        out_b = ti * tk * O_pad * o_bytes
        bias_b = O_pad * 4
        return 2 * (sup_b + x_b + w_b + out_b + bias_b)   # double-buffered pipeline

    while _vmem_use(TK, TI) > vmem_limit and TK > 8:
        TK = max(8, _round_up(pl.cdiv(TK, 2), 8))
        K_pad = _round_up(K, TK)

    # v7x has 2 TensorCores: guarantee >= 2 steps on a parallel grid axis.
    if (I_pad // TI) * (K_pad // TK) < 2 and K >= 16:
        TK = _round_up(pl.cdiv(K, 2), 8)
        K_pad = _round_up(K, TK)

    # ---- One-time layout plumbing / casts in the wrapper ------------------
    sup = supports.astype(compute_dtype)
    if K_pad != K:
        sup = jnp.pad(sup, ((0, 0), (0, K_pad - K), (0, 0)))

    x = jnp.transpose(inputs, (1, 0, 2)).astype(compute_dtype)        # (M, I, L)
    x = jnp.pad(x, ((0, 0), (0, I_pad - I), (0, L_eff - L)))
    x = x.reshape(M, I_pad * L_eff)                 # batch folded into lanes

    w2d = jnp.pad(weight.astype(compute_dtype),
                  ((0, 0), (0, L_eff - L), (0, O_pad - O)))
    w2d = w2d.reshape(J * L_eff, O_pad)             # J reduction pre-fused
    b = jnp.pad(bias.astype(jnp.float32), (0, O_pad - O)).reshape(1, O_pad)

    # Grid: K tiles outer, batch tiles INNER -> supports block fetched once per
    # K tile and kept resident; only the small inputs block is re-streamed.
    grid = (K_pad // TK, I_pad // TI)

    flops = 2 * I * J * K * M * L + 2 * I * J * K * L * O
    bytes_accessed = int(
        sup.size * sup.dtype.itemsize                     # each K tile fetched once
        + x.size * x.dtype.itemsize * (K_pad // TK)       # inputs re-streamed per K tile
        + w2d.size * w2d.dtype.itemsize
        + b.size * b.dtype.itemsize
        + I_pad * K_pad * O_pad * o_bytes)

    out_full = pl.pallas_call(
        _make_graphconv_kernel(TI, J, L_eff, compute_dtype),
        out_shape=jax.ShapeDtypeStruct((I_pad, K_pad, O_pad), out_dtype),
        grid_spec=pltpu.PrefetchScalarGridSpec(
            num_scalar_prefetch=0,
            grid=grid,
            in_specs=[
                pl.BlockSpec((J, TK, M), lambda kt, it: (0, kt, 0)),       # supports
                pl.BlockSpec((M, TI * L_eff), lambda kt, it: (0, it)),     # inputs
                pl.BlockSpec((J * L_eff, O_pad), lambda kt, it: (0, 0)),   # fused weight
                pl.BlockSpec((1, O_pad), lambda kt, it: (0, 0)),           # bias
            ],
            out_specs=pl.BlockSpec((TI, TK, O_pad), lambda kt, it: (it, kt, 0)),
        ),
        compiler_params=pltpu.CompilerParams(
            dimension_semantics=("parallel", "parallel"),
            vmem_limit_bytes=vmem_limit,
        ),
        cost_estimate=pl.CostEstimate(
            flops=flops, transcendentals=0, bytes_accessed=bytes_accessed),
    )(sup, x, w2d, b)

    return out_full[:I, :K, :O]


def _xavier_normal_std(shape, gain=1.414):
    # PyTorch xavier_normal_ on (J, L, O): fan_in = L*O, fan_out = J*O
    receptive = 1
    for d in shape[2:]:
        receptive *= d
    fan_in = shape[1] * receptive
    fan_out = shape[0] * receptive
    return gain * (2.0 / (fan_in + fan_out)) ** 0.5


if __name__ == "__main__":
    # Small, deterministic shapes consistent with the forward pass.
    I = 2    # batch
    J = 3    # number of supports (diffusion matrices)
    N = 16   # nodes (K == M)
    L = 8    # input_size
    O = 32   # output_size

    key = jax.random.PRNGKey(0)
    k_sup, k_in, k_w = jax.random.split(key, 3)

    supports = jax.random.normal(k_sup, (J, N, N), dtype=jnp.float32)
    inputs = jax.random.normal(k_in, (I, N, L), dtype=jnp.float32)

    w_std = _xavier_normal_std((J, L, O), gain=1.414)
    weight = w_std * jax.random.normal(k_w, (J, L, O), dtype=jnp.float32)
    bias = jnp.zeros((O,), dtype=jnp.float32)  # nn.init.constant_(bias, 0.0)

    out = graph_conv(supports, inputs, weight, bias)
    out = jax.block_until_ready(out)

    # Reference check (plain f32 JAX einsum, mirrors the PyTorch forward).
    aggr_ref = jnp.einsum('jkm,iml->ijkl', supports, inputs)
    out_ref = jnp.einsum('ijkl,jlm->ikm', aggr_ref, weight) + bias

    assert out.shape == (I, N, O)
    # bf16 MXU operands with f32 accumulation -> relaxed tolerance vs f32 ref.
    max_err = float(jnp.max(jnp.abs(out - out_ref)))
    assert jnp.allclose(out, out_ref, atol=5e-2, rtol=5e-2), max_err

    print("KERNEL_OK")
</pallas_src>

<mosaic_0001>
module attributes {stable_mosaic.version = 11 : i64} {
  func.func @kernel(%arg0: i32, %arg1: i32, %arg2: memref<3x8x16xbf16, #tpu.memory_space<vmem>>, %arg3: memref<16x16xbf16, #tpu.memory_space<vmem>>, %arg4: memref<24x128xbf16, #tpu.memory_space<vmem>>, %arg5: memref<1x128xf32, #tpu.memory_space<vmem>>, %arg6: memref<2x8x128xf32, #tpu.memory_space<vmem>>) attributes {dimension_semantics = [#tpu.dimension_semantics<parallel>, #tpu.dimension_semantics<parallel>], iteration_bounds = array<i64: 2, 1>, scalar_prefetch = 0 : i64, scratch_operands = 0 : i64, tpu.core_type = #tpu.core_type<tc>, window_params = [{transform_indices = @transform_0, window_bounds = array<i64: 3, 8, 16>}, {transform_indices = @transform_1, window_bounds = array<i64: 16, 16>}, {pipeline_mode = #tpu.pipeline_mode<synchronous>, transform_indices = @transform_2, window_bounds = array<i64: 24, 128>}, {pipeline_mode = #tpu.pipeline_mode<synchronous>, transform_indices = @transform_3, window_bounds = array<i64: 1, 128>}, {transform_indices = @transform_4, window_bounds = array<i64: 2, 8, 128>}]} {
    %c0 = arith.constant 0 : index
    %c0_0 = arith.constant 0 : index
    %0 = vector.load %arg3[%c0, %c0_0] : memref<16x16xbf16, #tpu.memory_space<vmem>>, vector<16x16xbf16>
    %c0_1 = arith.constant 0 : index
    %c0_2 = arith.constant 0 : index
    %1 = vector.load %arg4[%c0_1, %c0_2] : memref<24x128xbf16, #tpu.memory_space<vmem>>, vector<24x128xbf16>
    %c0_3 = arith.constant 0 : index
    %c0_4 = arith.constant 0 : index
    %2 = vector.load %arg5[%c0_3, %c0_4] : memref<1x128xf32, #tpu.memory_space<vmem>>, vector<1x128xf32>
    %c0_5 = arith.constant 0 : index
    %c0_6 = arith.constant 0 : index
    %c0_7 = arith.constant 0 : index
    %3 = vector.load %arg2[%c0_5, %c0_6, %c0_7] : memref<3x8x16xbf16, #tpu.memory_space<vmem>>, vector<1x8x16xbf16>
    %4 = vector.shape_cast %3 : vector<1x8x16xbf16> to vector<8x16xbf16>
    %cst = arith.constant dense<0.000000e+00> : vector<8x16xf32>
    %5 = tpu.matmul %4, %0, %cst {dimension_numbers = #tpu.dot_dimension_numbers<[1], [0], [0], [1], [0, 0, 1, 1], [], []>} : vector<8x16xbf16>, vector<16x16xbf16>, vector<8x16xf32> -> vector<8x16xf32>
    %c1 = arith.constant 1 : index
    %c0_8 = arith.constant 0 : index
    %c0_9 = arith.constant 0 : index
    %6 = vector.load %arg2[%c1, %c0_8, %c0_9] : memref<3x8x16xbf16, #tpu.memory_space<vmem>>, vector<1x8x16xbf16>
    %7 = vector.shape_cast %6 : vector<1x8x16xbf16> to vector<8x16xbf16>
    %cst_10 = arith.constant dense<0.000000e+00> : vector<8x16xf32>
    %8 = tpu.matmul %7, %0, %cst_10 {dimension_numbers = #tpu.dot_dimension_numbers<[1], [0], [0], [1], [0, 0, 1, 1], [], []>} : vector<8x16xbf16>, vector<16x16xbf16>, vector<8x16xf32> -> vector<8x16xf32>
    %c2 = arith.constant 2 : index
    %c0_11 = arith.constant 0 : index
    %c0_12 = arith.constant 0 : index
    %9 = vector.load %arg2[%c2, %c0_11, %c0_12] : memref<3x8x16xbf16, #tpu.memory_space<vmem>>, vector<1x8x16xbf16>
    %10 = vector.shape_cast %9 : vector<1x8x16xbf16> to vector<8x16xbf16>
    %cst_13 = arith.constant dense<0.000000e+00> : vector<8x16xf32>
    %11 = tpu.matmul %10, %0, %cst_13 {dimension_numbers = #tpu.dot_dimension_numbers<[1], [0], [0], [1], [0, 0, 1, 1], [], []>} : vector<8x16xbf16>, vector<16x16xbf16>, vector<8x16xf32> -> vector<8x16xf32>
    %12 = vector.extract_strided_slice %5 {offsets = [0, 0], sizes = [8, 8], strides = [1, 1]} : vector<8x16xf32> to vector<8x8xf32>
    %13 = arith.truncf %12 : vector<8x8xf32> to vector<8x8xbf16>
    %14 = vector.extract_strided_slice %8 {offsets = [0, 0], sizes = [8, 8], strides = [1, 1]} : vector<8x16xf32> to vector<8x8xf32>
    %15 = arith.truncf %14 : vector<8x8xf32> to vector<8x8xbf16>
    %16 = vector.extract_strided_slice %11 {offsets = [0, 0], sizes = [8, 8], strides = [1, 1]} : vector<8x16xf32> to vector<8x8xf32>
    %17 = arith.truncf %16 : vector<8x8xf32> to vector<8x8xbf16>
    %18 = tpu.concatenate %13, %15, %17 in 1 : vector<8x8xbf16>, vector<8x8xbf16>, vector<8x8xbf16> -> vector<8x24xbf16>
    %cst_14 = arith.constant dense<0.000000e+00> : vector<8x128xf32>
    %19 = tpu.matmul %18, %1, %cst_14 {dimension_numbers = #tpu.dot_dimension_numbers<[1], [0], [0], [1], [0, 0, 1, 1], [], []>} : vector<8x24xbf16>, vector<24x128xbf16>, vector<8x128xf32> -> vector<8x128xf32>
    %20 = vector.broadcast %2 : vector<1x128xf32> to vector<8x128xf32>
    %21 = arith.addf %19, %20 : vector<8x128xf32>
    %c0_15 = arith.constant 0 : index
    %c0_16 = arith.constant 0 : index
    %c0_17 = arith.constant 0 : index
    %22 = vector.load %arg6[%c0_15, %c0_16, %c0_17] : memref<2x8x128xf32, #tpu.memory_space<vmem>>, vector<1x8x128xf32>
    %23 = vector.shape_cast %22 : vector<1x8x128xf32> to vector<8x128xf32>
    %24 = vector.shape_cast %21 : vector<8x128xf32> to vector<1x8x128xf32>
    tpu.vector_store %arg6[%c0_15, %c0_16, %c0_17], %24 {strides = array<i32>} : memref<2x8x128xf32, #tpu.memory_space<vmem>>, vector<1x8x128xf32>,
    %25 = vector.extract_strided_slice %5 {offsets = [0, 8], sizes = [8, 8], strides = [1, 1]} : vector<8x16xf32> to vector<8x8xf32>
    %26 = arith.truncf %25 : vector<8x8xf32> to vector<8x8xbf16>
    %27 = vector.extract_strided_slice %8 {offsets = [0, 8], sizes = [8, 8], strides = [1, 1]} : vector<8x16xf32> to vector<8x8xf32>
    %28 = arith.truncf %27 : vector<8x8xf32> to vector<8x8xbf16>
    %29 = vector.extract_strided_slice %11 {offsets = [0, 8], sizes = [8, 8], strides = [1, 1]} : vector<8x16xf32> to vector<8x8xf32>
    %30 = arith.truncf %29 : vector<8x8xf32> to vector<8x8xbf16>
    %31 = tpu.concatenate %26, %28, %30 in 1 : vector<8x8xbf16>, vector<8x8xbf16>, vector<8x8xbf16> -> vector<8x24xbf16>
    %cst_18 = arith.constant dense<0.000000e+00> : vector<8x128xf32>
    %32 = tpu.matmul %31, %1, %cst_18 {dimension_numbers = #tpu.dot_dimension_numbers<[1], [0], [0], [1], [0, 0, 1, 1], [], []>} : vector<8x24xbf16>, vector<24x128xbf16>, vector<8x128xf32> -> vector<8x128xf32>
    %33 = vector.broadcast %2 : vector<1x128xf32> to vector<8x128xf32>
    %34 = arith.addf %32, %33 : vector<8x128xf32>
    %c1_19 = arith.constant 1 : index
    %c0_20 = arith.constant 0 : index
    %c0_21 = arith.constant 0 : index
    %35 = vector.load %arg6[%c1_19, %c0_20, %c0_21] : memref<2x8x128xf32, #tpu.memory_space<vmem>>, vector<1x8x128xf32>
    %36 = vector.shape_cast %35 : vector<1x8x128xf32> to vector<8x128xf32>
    %37 = vector.shape_cast %34 : vector<8x128xf32> to vector<1x8x128xf32>
    tpu.vector_store %arg6[%c1_19, %c0_20, %c0_21], %37 {strides = array<i32>} : memref<2x8x128xf32, #tpu.memory_space<vmem>>, vector<1x8x128xf32>,
    return
  }
  func.func @transform_0(%arg0: i32, %arg1: i32) -> (i32, i32, i32) {
    %c0_i32 = arith.constant 0 : i32
    %c0_i32_0 = arith.constant 0 : i32
    %c0_i32_1 = arith.constant 0 : i32
    return %c0_i32, %arg0, %c0_i32_0 : i32, i32, i32
  }
  func.func @transform_1(%arg0: i32, %arg1: i32) -> (i32, i32) {
    %c0_i32 = arith.constant 0 : i32
    %c0_i32_0 = arith.constant 0 : i32
    return %c0_i32, %arg1 : i32, i32
  }
  func.func @transform_2(%arg0: i32, %arg1: i32) -> (i32, i32) {
    %c0_i32 = arith.constant 0 : i32
    %c0_i32_0 = arith.constant 0 : i32
    %c0_i32_1 = arith.constant 0 : i32
    return %c0_i32, %c0_i32_0 : i32, i32
  }
  func.func @transform_3(%arg0: i32, %arg1: i32) -> (i32, i32) {
    %c0_i32 = arith.constant 0 : i32
    %c0_i32_0 = arith.constant 0 : i32
    %c0_i32_1 = arith.constant 0 : i32
    return %c0_i32, %c0_i32_0 : i32, i32
  }
  func.func @transform_4(%arg0: i32, %arg1: i32) -> (i32, i32, i32) {
    %c0_i32 = arith.constant 0 : i32
    %c0_i32_0 = arith.constant 0 : i32
    return %arg1, %arg0, %c0_i32 : i32, i32, i32
  }
}

</mosaic_0001>

<llo_original>
// kernel: tpu_custom_call.1
$region0: #{tpu_custom_call.1}
  #allocation0 [shape = 'u32[]', space=smem, size = 0x4, offset = 0x4, fixed_abs, tag = 'smem constant byte address 0x4 - core index']
  #allocation1 [shape = 'u32[144,128]{1,0:T(1,128)}', space=vmem, size = 0x12000, scoped, tag = 'internal scratch']
  %s0 = inlined_call_operand.hbm [shape: bf16[3,16,16], index: 0, kind: input, shape index: {}]
  %s1 = inlined_call_operand.hbm [shape: bf16[16,16], index: 1, kind: input, shape index: {}]
  %s2 = inlined_call_operand.hbm [shape: bf16[24,128], index: 2, kind: input, shape index: {}]
  %s3 = inlined_call_operand.vmem [shape: f32[1,128], index: 3, kind: input, shape index: {}]
  %s4 = inlined_call_operand.hbm [shape: f32[2,16,128], index: 4, kind: output, shape index: {}]
  %s5 = sld [smem:[#allocation0]]
  $region61: #{tpu_custom_call.1} parent=0
    _
  %s7 = ssub.s32 1, %s5
  %s8 = scalar_select 0, %s7, %s5
  $region1: #{tpu_custom_call.1} parent=0
    #allocation2 [shape = 'u8[12288]{0}', space=vmem, size = 0x3000, scoped, tag = 'input window, operand 0']
    #allocation3 [shape = 's32[2]{0}', space=sflag, size = 0x8, scoped, tag = 'scoped memory for tpu_custom_call.1']
    #allocation4 [shape = 's32[2]{0}', space=sflag, size = 0x8, scoped, tag = 'scoped memory for tpu_custom_call.1']
    #allocation5 [shape = 'u8[4096]{0}', space=vmem, size = 0x1000, scoped, tag = 'input window, operand 1, single buffered']
    #allocation6 [shape = 's32[1]{0}', space=sflag, size = 0x4, scoped, tag = 'scoped memory for tpu_custom_call.1']
    #allocation7 [shape = 'u8[6144]{0}', space=vmem, size = 0x1800, scoped, tag = 'input window, operand 2, single buffered']
    #allocation8 [shape = 'u8[16384]{0}', space=vmem, size = 0x4000, scoped, tag = 'output window, operand 0']
    %9 = vsyncpa [#allocation3], 0
    %s10 = scalar_lea.sflag [#allocation3], 1
    %11 = vsyncpa %s10, 0
    %12 = vsyncpa [#allocation6], 0
    %13 = vsyncpa [#allocation4], 0
    %s14 = scalar_lea.sflag [#allocation4], 1
    %15 = vsyncpa %s14, 0
    loop: start=0, step=1, limit=4
    $region2: #{tpu_custom_call.1} parent=1 // loop_pre_header
      _
    $region3: #{tpu_custom_call.1} parent=1 // loop_header
      %s17 = sphi 0, %s21
      %p18 = scmp.ge.s32.totalorder %s17, 4
      %s24 = sphi 0, %s36
      %s25 = sphi 0, %s32
      %s26 = sphi 0, %s24
      %s27 = sphi 0, %s25
      %s28 = sphi 0, %s26
      %s29 = sphi 0, %s27
      %s39 = sphi 0, %s41
      %s42 = sphi 0, %s39
      %s43 = sphi 0, %s42
      %s59 = sphi 0, %s43
      %s65 = sphi 0, %s67
      %s68 = sphi 0, %s65
      %s69 = sphi 0, %s68
      %s85 = sphi 0, %s69
      %s89 = sphi 0, %s89
      %s91 = sphi 0, %s89
      %s92 = sphi 0, %s91
      %s106 = sphi 0, %s92
      %s110 = sphi 0, %s110
      %s112 = sphi 0, %s110
      %s113 = sphi 0, %s112
      %s127 = sphi 0, %s113
      %s135 = sphi 0, %s137
      %s138 = sphi 0, %s135
      %s139 = sphi 0, %s138
      %s155 = sphi 0, %s139
    $region4: #{tpu_custom_call.1} parent=1 // loop_header_branch
      %20 = sbr.rel (%p18) target = $region8
    $region5: #{tpu_custom_call.1} parent=1 // loop_body
      %s22 = ssub.s32 %s17, 1
      %s23 = ssub.s32 %s17, 2
      %s30 = sadd.s32 1, %s25
      %p31 = scmp.ge.s32.totalorder %s30, 1
      %s32 = scalar_select %p31, 0, %s30
      %s33 = sadd.s32 1, %s24
      %s34 = scalar_select %p31, %s33, %s24
      %p35 = scmp.ge.s32.totalorder %s34, 2
      %s36 = scalar_select %p35, 0, %s34
      %s37 = ssub.s32 %s24, %s36
      %p38 = scmp.eq.s32.totalorder %s37, 0
      %s40 = sadd.s32 %s39, 1
      %s41 = scalar_select %p38, %s39, %s40
      %p44 = pneg %p38
      %p45 = scmp.eq.s32.totalorder %s17, 1
      %p46 = por %p44, %p45
      %p47 = scmp.ne.s32.totalorder %s39, %s42
      %p48 = scmp.eq.s32.totalorder %s17, 0
      %p49 = por %p47, %p48
      %p50 = scmp.ne.s32.totalorder %s39, %s42
      %p51 = scmp.eq.s32.totalorder %s22, 1
      %p52 = por %p50, %p51
      %p53 = scmp.ne.s32.totalorder %s42, %s43
      %p54 = scmp.eq.s32.totalorder %s22, 0
      %p55 = por %p53, %p54
      %p56 = scmp.ne.s32.totalorder %s42, %s43
      %p57 = scmp.eq.s32.totalorder %s23, 1
      %p58 = por %p56, %p57
      %p60 = scmp.ne.s32.totalorder %s43, %s59
      %p61 = scmp.eq.s32.totalorder %s23, 0
      %p62 = por %p60, %p61
      %s63 = ssub.s32 %s25, %s32
      %p64 = scmp.eq.s32.totalorder %s63, 0
      %s66 = sadd.s32 %s65, 1
      %s67 = scalar_select %p64, %s65, %s66
      %p70 = pneg %p64
      %p71 = scmp.eq.s32.totalorder %s17, 1
      %p72 = por %p70, %p71
      %p73 = scmp.ne.s32.totalorder %s65, %s68
      %p74 = scmp.eq.s32.totalorder %s17, 0
      %p75 = por %p73, %p74
      %p76 = scmp.ne.s32.totalorder %s65, %s68
      %p77 = scmp.eq.s32.totalorder %s22, 1
      %p78 = por %p76, %p77
      %p79 = scmp.ne.s32.totalorder %s68, %s69
      %p80 = scmp.eq.s32.totalorder %s22, 0
      %p81 = por %p79, %p80
      %p82 = scmp.ne.s32.totalorder %s68, %s69
      %p83 = scmp.eq.s32.totalorder %s23, 1
      %p84 = por %p82, %p83
      %p86 = scmp.ne.s32.totalorder %s69, %s85
      %p87 = scmp.eq.s32.totalorder %s23, 0
      %p88 = por %p86, %p87
      %s90 = sadd.s32 %s89, 1
      %p93 = scmp.eq.s32.totalorder %s17, 1
      %p94 = scmp.ne.s32.totalorder %s89, %s91
      %p95 = scmp.eq.s32.totalorder %s17, 0
      %p96 = por %p94, %p95
      %p97 = scmp.ne.s32.totalorder %s89, %s91
      %p98 = scmp.eq.s32.totalorder %s22, 1
      %p99 = por %p97, %p98
      %p100 = scmp.ne.s32.totalorder %s91, %s92
      %p101 = scmp.eq.s32.totalorder %s22, 0
      %p102 = por %p100, %p101
      %p103 = scmp.ne.s32.totalorder %s91, %s92
      %p104 = scmp.eq.s32.totalorder %s23, 1
      %p105 = por %p103, %p104
      %p107 = scmp.ne.s32.totalorder %s92, %s106
      %p108 = scmp.eq.s32.totalorder %s23, 0
      %p109 = por %p107, %p108
      %s111 = sadd.s32 %s110, 1
      %p114 = scmp.eq.s32.totalorder %s17, 1
      %p115 = scmp.ne.s32.totalorder %s110, %s112
      %p116 = scmp.eq.s32.totalorder %s17, 0
      %p117 = por %p115, %p116
      %p118 = scmp.ne.s32.totalorder %s110, %s112
      %p119 = scmp.eq.s32.totalorder %s22, 1
      %p120 = por %p118, %p119
      %p121 = scmp.ne.s32.totalorder %s112, %s113
      %p122 = scmp.eq.s32.totalorder %s22, 0
      %p123 = por %p121, %p122
      %p124 = scmp.ne.s32.totalorder %s112, %s113
      %p125 = scmp.eq.s32.totalorder %s23, 1
      %p126 = por %p124, %p125
      %p128 = scmp.ne.s32.totalorder %s113, %s127
      %p129 = scmp.eq.s32.totalorder %s23, 0
      %p130 = por %p128, %p129
      %s131 = ssub.s32 %s25, %s32
      %s132 = ssub.s32 %s24, %s36
      %s133 = sor.u32 %s131, %s132
      %p134 = scmp.eq.s32.totalorder %s133, 0
      %s136 = sadd.s32 %s135, 1
      %s137 = scalar_select %p134, %s135, %s136
      %p140 = pneg %p134
      %p141 = scmp.eq.s32.totalorder %s17, 1
      %p142 = por %p140, %p141
      %p143 = scmp.ne.s32.totalorder %s135, %s138
      %p144 = scmp.eq.s32.totalorder %s17, 0
      %p145 = por %p143, %p144
      %p146 = scmp.ne.s32.totalorder %s135, %s138
      %p147 = scmp.eq.s32.totalorder %s22, 1
      %p148 = por %p146, %p147
      %p149 = scmp.ne.s32.totalorder %s138, %s139
      %p150 = scmp.eq.s32.totalorder %s22, 0
      %p151 = por %p149, %p150
      %p152 = scmp.ne.s32.totalorder %s138, %s139
      %p153 = scmp.eq.s32.totalorder %s23, 1
      %p154 = por %p152, %p153
      %p156 = scmp.ne.s32.totalorder %s139, %s155
      %p157 = scmp.eq.s32.totalorder %s23, 0
      %p158 = por %p156, %p157
      %p159 = scmp.le.s32.totalorder 1, %s17
      %p160 = scmp.lt.s32.totalorder %s17, 3
      %p161 = pnand %p159, %p160
      %p162 = pneg %p161
      // Predicated region
      $region9: #{tpu_custom_call.1} parent=5 // pred_check
        _
      $region10: #{tpu_custom_call.1} parent=5 // pred_check_branch
        %164 = sbr.rel (%p161) target = $region12
      $region11: #{tpu_custom_call.1} parent=5 // pred_region
        %s165 = ssub.s32 %s17, 1
        // Predicated region
        $region13: #{tpu_custom_call.1} parent=11 // pred_check
          %p166 = pneg %p81
        $region14: #{tpu_custom_call.1} parent=11 // pred_check_branch
          %168 = sbr.rel (%p166) target = $region16
        $region15: #{tpu_custom_call.1} parent=11 // pred_region
          %s170 = ssub.s32 128, 128
          %171 = vsyncadd [#allocation6], %s170
          %s172 = smul.addr %s27, 64
          %s173 = scalar_lea.hbm %s1, %s172
          %s174 = sshll.u32 [#allocation5], 4
          %s175 = int_to_ptr.vmem [resolvable:$true] %s174
          %180 = dma.hbm_to_vmem [thread:$0]  %s173, 128, %s175, [#allocation6], 64, 64, 4
        $region16: #{tpu_custom_call.1} parent=11 // pred_fallthru
          _
        // Predicated region
        $region17: #{tpu_custom_call.1} parent=11 // pred_check
          %p181 = pneg %p102
        $region18: #{tpu_custom_call.1} parent=11 // pred_check_branch
          %183 = sbr.rel (%p181) target = $region20
        $region19: #{tpu_custom_call.1} parent=11 // pred_region
          %s185 = ssub.s32 192, 192
          %186 = vsyncadd [#allocation6], %s185
          %s187 = sshll.u32 [#allocation7], 4
          %s188 = int_to_ptr.vmem [resolvable:$true] %s187
          %193 = dma.hbm_to_vmem [thread:$0]  %s2, 192, %s188, [#allocation6], 64, 64, 4
        $region20: #{tpu_custom_call.1} parent=11 // pred_fallthru
          _
        // Predicated region
        $region21: #{tpu_custom_call.1} parent=11 // pred_check
          %p194 = pneg %p123
        $region22: #{tpu_custom_call.1} parent=11 // pred_check_branch
          %196 = sbr.rel (%p194) target = $region24
        $region23: #{tpu_custom_call.1} parent=11 // pred_region
          _
        $region24: #{tpu_custom_call.1} parent=11 // pred_fallthru
          _
      $region12: #{tpu_custom_call.1} parent=5 // pred_fallthru
        _
      %p197 = scmp.lt.s32.totalorder %s17, 2
      // Predicated region
      $region25: #{tpu_custom_call.1} parent=5 // pred_check
        %p198 = pneg %p197
      $region26: #{tpu_custom_call.1} parent=5 // pred_check_branch
        %200 = sbr.rel (%p198) target = $region28
      $region27: #{tpu_custom_call.1} parent=5 // pred_region
        // Predicated region
        $region29: #{tpu_custom_call.1} parent=27 // pred_check
          %p201 = pneg %p49
        $region30: #{tpu_custom_call.1} parent=27 // pred_check_branch
          %203 = sbr.rel (%p201) target = $region32
        $region31: #{tpu_custom_call.1} parent=27 // pred_region
          %s204 = sand.u32 %s39, 1
          %s205 = scalar_lea.sflag [#allocation3], %s204
          %s206 = sand.u32 %s39, 1
          %s207 = smul.addr %s206, 12
          %s208 = scalar_lea.vmem [#allocation2], %s207
          %s210 = ssub.s32 192, 192
          %211 = vsyncadd %s205, %s210
          %s212 = smul.addr %s24, 64
          %s213 = scalar_lea.hbm %s0, %s212
          %s214 = sshll.u32 %s208, 4
          %s215 = int_to_ptr.vmem [resolvable:$true] %s214
          %220 = dma.hbm_to_vmem [thread:$0]  %s213, 192, %s215, %s205, 128, 64, 4
        $region32: #{tpu_custom_call.1} parent=27 // pred_fallthru
          _
      $region28: #{tpu_custom_call.1} parent=5 // pred_fallthru
        _
      %p221 = scmp.le.s32.totalorder 1, %s17
      %p222 = scmp.lt.s32.totalorder %s17, 3
      %p223 = pnand %p221, %p222
      %p224 = pneg %p223
      // Predicated region
      $region33: #{tpu_custom_call.1} parent=5 // pred_check
        _
      $region34: #{tpu_custom_call.1} parent=5 // pred_check_branch
        %226 = sbr.rel (%p223) target = $region36
      $region35: #{tpu_custom_call.1} parent=5 // pred_region
        %s227 = ssub.s32 %s17, 1
        %s228 = sand.u32 %s42, 1
        %s229 = scalar_lea.sflag [#allocation3], %s228
        %s230 = sand.u32 %s42, 1
        %s231 = smul.addr %s230, 12
        %s232 = scalar_lea.vmem [#allocation2], %s231
        // Predicated region
        $region37: #{tpu_custom_call.1} parent=35 // pred_check
          %p233 = pneg %p55
        $region38: #{tpu_custom_call.1} parent=35 // pred_check_branch
          %235 = sbr.rel (%p233) target = $region40
        $region39: #{tpu_custom_call.1} parent=35 // pred_region
          %236 = dma.done %s229, 192
        $region40: #{tpu_custom_call.1} parent=35 // pred_fallthru
          _
        // Predicated region
        $region41: #{tpu_custom_call.1} parent=35 // pred_check
          %p237 = pneg %p81
        $region42: #{tpu_custom_call.1} parent=35 // pred_check_branch
          %239 = sbr.rel (%p237) target = $region44
        $region43: #{tpu_custom_call.1} parent=35 // pred_region
          %240 = dma.done [#allocation6], 128
        $region44: #{tpu_custom_call.1} parent=35 // pred_fallthru
          _
        // Predicated region
        $region45: #{tpu_custom_call.1} parent=35 // pred_check
          %p241 = pneg %p102
        $region46: #{tpu_custom_call.1} parent=35 // pred_check_branch
          %243 = sbr.rel (%p241) target = $region48
        $region47: #{tpu_custom_call.1} parent=35 // pred_region
          %244 = dma.done [#allocation6], 192
        $region48: #{tpu_custom_call.1} parent=35 // pred_fallthru
          _
        %s245 = sand.u32 %s42, 1
        %s246 = scalar_lea.sflag [#allocation3], %s245
        %s247 = sand.u32 %s42, 1
        %s248 = smul.addr %s247, 12
        %s249 = scalar_lea.vmem [#allocation2], %s248
        %p250 = pneg %p55
        %p251 = pneg %p52
        %p252 = pneg %p81
        %p253 = pneg %p78
        %p254 = pneg %p102
        %p255 = pneg %p99
        %p256 = pneg %p123
        %p257 = pneg %p120
        %p258 = pneg %p151
        %p259 = pneg %p148
        %s260 = sand.u32 %s138, 1
        %s261 = scalar_lea.sflag [#allocation4], %s260
        %s262 = sand.u32 %s138, 1
        %s263 = smul.addr %s262, 16
        %s264 = scalar_lea.vmem [#allocation8], %s263
        %s265 = smul.u32 2, %s27
        %v267 = vld [vmem:[#allocation5] sm:$0xf]
        %v268 = vld [vmem:[#allocation5 + $0x4] sm:$0xf]
        %v269 = vld [vmem:[#allocation7] sm:$0xf]
        %v270 = vld [vmem:[#allocation7 + $0x4] sm:$0xf]
        %v271 = vld [vmem:[#allocation7 + $0x8] sm:$0xf]
        %v272 = vld [vmem:[%s3] sm:$0x1]
        %v273 = vld [vmem:[%s232] sm:$0xf]
        %v276 = vunpack.c.l.b16 %v267
        %v277 = vunpack.c.l.b16 %v268
        %v278 = vpack.c.b16 %v277, %v276
        %vm280 = vcmask 130048
        %v282 = vsel %vm280, %v273, 0
        %284 = vmatprep.subr.bf16.mxu0 0
        %285 = vmatpush1.bf16.msra.mxu0 0
        %286 = vmatprep.subr.bf16.mxu0 0
        %287 = vmatpush1.bf16.msra.mxu0 0
        %288 = vmatprep.subr.bf16.mxu0 0
        %289 = vmatpush1.bf16.msra.mxu0 0
        %290 = vmatprep.subr.bf16.mxu0 0
        %291 = vmatpush1.bf16.msra.mxu0 0
        %292 = vmatprep.subr.bf16.mxu0 0
        %293 = vmatpush1.bf16.msra.mxu0 0
        %294 = vmatprep.subr.bf16.mxu0 0
        %295 = vmatpush1.bf16.msra.mxu0 0
        %296 = vmatprep.subr.bf16.mxu0 0
        %297 = vmatpush1.bf16.msra.mxu0 0
        %298 = vmatprep.subr.bf16.mxu0 0
        %299 = vmatpush1.bf16.msra.mxu0 %v278
        %300 = vmatprep.subr.bf16.mxu0 0
        %301 = vmatpush2.bf16.msra.mxu0 0
        %302 = vmatprep.subr.bf16.mxu0 0
        %303 = vmatpush2.bf16.msra.mxu0 0
        %304 = vmatprep.subr.bf16.mxu0 0
        %305 = vmatpush2.bf16.msra.mxu0 0
        %306 = vmatprep.subr.bf16.mxu0 0
        %307 = vmatpush2.bf16.msra.mxu0 0
        %308 = vmatprep.subr.bf16.mxu0 0
        %309 = vmatpush2.bf16.msra.mxu0 0
        %310 = vmatprep.subr.bf16.mxu0 0
        %311 = vmatpush2.bf16.msra.mxu0 0
        %312 = vmatprep.subr.bf16.mxu0 0
        %313 = vmatpush2.bf16.msra.mxu0 0
        %314 = vmatprep.subr.bf16.mxu0 0
        %315 = vmatpush2.bf16.msra.mxu0 0
        %316 = vmatprep.mubr.bf16.mxu0 0
        %317 = vmatmul.mubr.bf16.gmra.mxu0 %v282
        %v318 = vpop.f32.mrf.mxu0
        %v319 = vadd.f32 0.0, %v318
        %v320 = vpop.f32.mrf.mxu0
        %v321 = vpop.f32.mrf.mxu0
        %v322 = vpop.f32.mrf.mxu0
        %323 = vdwg.mxu0
        %s324 = scalar_lea.vmem %s232, 4 [#allocation2]
        %v325 = vld [vmem:[%s324] sm:$0xf]
        %v327 = vsel %vm280, %v325, 0
        %329 = vmatprep.subr.bf16.mxu0 0
        %330 = vmatpush1.bf16.msra.mxu0 0
        %331 = vmatprep.subr.bf16.mxu0 0
        %332 = vmatpush1.bf16.msra.mxu0 0
        %333 = vmatprep.subr.bf16.mxu0 0
        %334 = vmatpush1.bf16.msra.mxu0 0
        %335 = vmatprep.subr.bf16.mxu0 0
        %336 = vmatpush1.bf16.msra.mxu0 0
        %337 = vmatprep.subr.bf16.mxu0 0
        %338 = vmatpush1.bf16.msra.mxu0 0
        %339 = vmatprep.subr.bf16.mxu0 0
        %340 = vmatpush1.bf16.msra.mxu0 0
        %341 = vmatprep.subr.bf16.mxu0 0
        %342 = vmatpush1.bf16.msra.mxu0 0
        %343 = vmatprep.subr.bf16.mxu0 0
        %344 = vmatpush1.bf16.msra.mxu0 %v278
        %345 = vmatprep.subr.bf16.mxu0 0
        %346 = vmatpush2.bf16.msra.mxu0 0
        %347 = vmatprep.subr.bf16.mxu0 0
        %348 = vmatpush2.bf16.msra.mxu0 0
        %349 = vmatprep.subr.bf16.mxu0 0
        %350 = vmatpush2.bf16.msra.mxu0 0
        %351 = vmatprep.subr.bf16.mxu0 0
        %352 = vmatpush2.bf16.msra.mxu0 0
        %353 = vmatprep.subr.bf16.mxu0 0
        %354 = vmatpush2.bf16.msra.mxu0 0
        %355 = vmatprep.subr.bf16.mxu0 0
        %356 = vmatpush2.bf16.msra.mxu0 0
        %357 = vmatprep.subr.bf16.mxu0 0
        %358 = vmatpush2.bf16.msra.mxu0 0
        %359 = vmatprep.subr.bf16.mxu0 0
        %360 = vmatpush2.bf16.msra.mxu0 0
        %361 = vmatprep.mubr.bf16.mxu0 0
        %362 = vmatmul.mubr.bf16.gmra.mxu0 %v327
        %v363 = vpop.f32.mrf.mxu0
        %v364 = vadd.f32 0.0, %v363
        %v365 = vpop.f32.mrf.mxu0
        %v366 = vpop.f32.mrf.mxu0
        %v367 = vpop.f32.mrf.mxu0
        %368 = vdwg.mxu0
        %s369 = scalar_lea.vmem %s232, 8 [#allocation2]
        %v370 = vld [vmem:[%s369] sm:$0xf]
        %v372 = vsel %vm280, %v370, 0
        %374 = vmatprep.subr.bf16.mxu0 0
        %375 = vmatpush1.bf16.msra.mxu0 0
        %376 = vmatprep.subr.bf16.mxu0 0
        %377 = vmatpush1.bf16.msra.mxu0 0
        %378 = vmatprep.subr.bf16.mxu0 0
        %379 = vmatpush1.bf16.msra.mxu0 0
        %380 = vmatprep.subr.bf16.mxu0 0
        %381 = vmatpush1.bf16.msra.mxu0 0
        %382 = vmatprep.subr.bf16.mxu0 0
        %383 = vmatpush1.bf16.msra.mxu0 0
        %384 = vmatprep.subr.bf16.mxu0 0
        %385 = vmatpush1.bf16.msra.mxu0 0
        %386 = vmatprep.subr.bf16.mxu0 0
        %387 = vmatpush1.bf16.msra.mxu0 0
        %388 = vmatprep.subr.bf16.mxu0 0
        %389 = vmatpush1.bf16.msra.mxu0 %v278
        %390 = vmatprep.subr.bf16.mxu0 0
        %391 = vmatpush2.bf16.msra.mxu0 0
        %392 = vmatprep.subr.bf16.mxu0 0
        %393 = vmatpush2.bf16.msra.mxu0 0
        %394 = vmatprep.subr.bf16.mxu0 0
        %395 = vmatpush2.bf16.msra.mxu0 0
        %396 = vmatprep.subr.bf16.mxu0 0
        %397 = vmatpush2.bf16.msra.mxu0 0
        %398 = vmatprep.subr.bf16.mxu0 0
        %399 = vmatpush2.bf16.msra.mxu0 0
        %400 = vmatprep.subr.bf16.mxu0 0
        %401 = vmatpush2.bf16.msra.mxu0 0
        %402 = vmatprep.subr.bf16.mxu0 0
        %403 = vmatpush2.bf16.msra.mxu0 0
        %404 = vmatprep.subr.bf16.mxu0 0
        %405 = vmatpush2.bf16.msra.mxu0 0
        %406 = vmatprep.mubr.bf16.mxu0 0
        %407 = vmatmul.mubr.bf16.gmra.mxu0 %v372
        %v408 = vpop.f32.mrf.mxu0
        %v409 = vadd.f32 0.0, %v408
        %v410 = vpop.f32.mrf.mxu0
        %v411 = vpop.f32.mrf.mxu0
        %v412 = vpop.f32.mrf.mxu0
        %413 = vdwg.mxu0
        %v414 = vpack.c.bf16 %v319, %v319
        %v415 = vpack.c.bf16 %v364, %v364
        %v416 = vpack.c.bf16 %v409, %v409
        %418 = vrot.lane.b32.xlu0 %v415, 8
        %v419 = vpop.permute.xlu0 %418
        %421 = vrot.lane.b32.xlu0 %v416, 16
        %v422 = vpop.permute.xlu0 %421
        %vm423 = vcmask 64512
        %v426 = vsel %vm423, %v414, %v419
        %v428 = vsel %vm280, %v426, %v422
        %v430 = vlaneseq
        %v431 = vshrl.u32 %v430, 7
        %v432 = vsub.s32 0, %v431
        %v433 = vrot.slane %v272, %v432
        %v438 = vunpack.c.l.b16 %v269
        %v439 = vunpack.c.l.b16 %v270
        %v440 = vunpack.c.l.b16 %v271
        %v441 = vpack.c.b16 %v439, %v438
        %v442 = vpack.c.b16 %v440, %v440
        %vm444 = vcmask 195584
        %v445 = vsel %vm444, %v428, 0
        %vm447 = vcmask 1043456
        %v449 = vsel %vm447, %v442, 0
        %451 = vmatprep.subr.bf16.mxu0 0
        %452 = vmatpush1.bf16.msra.mxu0 0
        %453 = vmatprep.subr.bf16.mxu0 0
        %454 = vmatpush1.bf16.msra.mxu0 0
        %455 = vmatprep.subr.bf16.mxu0 0
        %456 = vmatpush1.bf16.msra.mxu0 0
        %457 = vmatprep.subr.bf16.mxu0 0
        %458 = vmatpush1.bf16.msra.mxu0 0
        %459 = vmatprep.subr.bf16.mxu0 0
        %460 = vmatpush1.bf16.msra.mxu0 0
        %461 = vmatprep.subr.bf16.mxu0 0
        %462 = vmatpush1.bf16.msra.mxu0 0
        %463 = vmatprep.subr.bf16.mxu0 0
        %464 = vmatpush1.bf16.msra.mxu0 %v449
        %465 = vmatprep.subr.bf16.mxu0 0
        %466 = vmatpush1.bf16.msra.mxu0 %v441
        %467 = vmatprep.subr.bf16.mxu0 0
        %468 = vmatpush2.bf16.msra.mxu0 0
        %469 = vmatprep.subr.bf16.mxu0 0
        %470 = vmatpush2.bf16.msra.mxu0 0
        %471 = vmatprep.subr.bf16.mxu0 0
        %472 = vmatpush2.bf16.msra.mxu0 0
        %473 = vmatprep.subr.bf16.mxu0 0
        %474 = vmatpush2.bf16.msra.mxu0 0
        %475 = vmatprep.subr.bf16.mxu0 0
        %476 = vmatpush2.bf16.msra.mxu0 0
        %477 = vmatprep.subr.bf16.mxu0 0
        %478 = vmatpush2.bf16.msra.mxu0 0
        %479 = vmatprep.subr.bf16.mxu0 0
        %480 = vmatpush2.bf16.msra.mxu0 0
        %481 = vmatprep.subr.bf16.mxu0 0
        %482 = vmatpush2.bf16.msra.mxu0 0
        %483 = vmatprep.mubr.bf16.mxu0 0
        %484 = vmatmul.mubr.bf16.gmra.mxu0 %v445
        %v485 = vpop.f32.mrf.mxu0
        %v486 = vadd.f32 %v433, %v485
        %v487 = vpop.f32.mrf.mxu0
        %v488 = vpop.f32.mrf.mxu0
        %v489 = vpop.f32.mrf.mxu0
        %490 = vdwg.mxu0
        %491 = vst [vmem:[%s264] sm:$0xff] %v486
        %493 = vrot.lane.b32.xlu0 %v414, 120
        %v494 = vpop.permute.xlu0 %493
        %495 = vrot.lane.b32.xlu0 %v416, 8
        %v496 = vpop.permute.xlu0 %495
        %v499 = vsel %vm423, %v494, %v415
        %v501 = vsel %vm280, %v499, %v496
        %v502 = vsel %vm444, %v501, 0
        %504 = vmatprep.subr.bf16.mxu0 0
        %505 = vmatpush1.bf16.msra.mxu0 0
        %506 = vmatprep.subr.bf16.mxu0 0
        %507 = vmatpush1.bf16.msra.mxu0 0
        %508 = vmatprep.subr.bf16.mxu0 0
        %509 = vmatpush1.bf16.msra.mxu0 0
        %510 = vmatprep.subr.bf16.mxu0 0
        %511 = vmatpush1.bf16.msra.mxu0 0
        %512 = vmatprep.subr.bf16.mxu0 0
        %513 = vmatpush1.bf16.msra.mxu0 0
        %514 = vmatprep.subr.bf16.mxu0 0
        %515 = vmatpush1.bf16.msra.mxu0 0
        %516 = vmatprep.subr.bf16.mxu0 0
        %517 = vmatpush1.bf16.msra.mxu0 %v449
        %518 = vmatprep.subr.bf16.mxu0 0
        %519 = vmatpush1.bf16.msra.mxu0 %v441
        %520 = vmatprep.subr.bf16.mxu0 0
        %521 = vmatpush2.bf16.msra.mxu0 0
        %522 = vmatprep.subr.bf16.mxu0 0
        %523 = vmatpush2.bf16.msra.mxu0 0
        %524 = vmatprep.subr.bf16.mxu0 0
        %525 = vmatpush2.bf16.msra.mxu0 0
        %526 = vmatprep.subr.bf16.mxu0 0
        %527 = vmatpush2.bf16.msra.mxu0 0
        %528 = vmatprep.subr.bf16.mxu0 0
        %529 = vmatpush2.bf16.msra.mxu0 0
        %530 = vmatprep.subr.bf16.mxu0 0
        %531 = vmatpush2.bf16.msra.mxu0 0
        %532 = vmatprep.subr.bf16.mxu0 0
        %533 = vmatpush2.bf16.msra.mxu0 0
        %534 = vmatprep.subr.bf16.mxu0 0
        %535 = vmatpush2.bf16.msra.mxu0 0
        %536 = vmatprep.mubr.bf16.mxu0 0
        %537 = vmatmul.mubr.bf16.gmra.mxu0 %v502
        %v538 = vpop.f32.mrf.mxu0
        %v539 = vadd.f32 %v433, %v538
        %v540 = vpop.f32.mrf.mxu0
        %v541 = vpop.f32.mrf.mxu0
        %v542 = vpop.f32.mrf.mxu0
        %543 = vdwg.mxu0
        %s544 = scalar_lea.vmem %s264, 8 [#allocation8]
        %545 = vst [vmem:[%s544] sm:$0xff] %v539
        %s546 = sand.u32 %s138, 1
        %s547 = scalar_lea.sflag [#allocation4], %s546
        %s548 = sand.u32 %s138, 1
        %s549 = smul.addr %s548, 16
        %s550 = scalar_lea.vmem [#allocation8], %s549
        // Predicated region
        $region49: #{tpu_custom_call.1} parent=35 // pred_check
          %p551 = pneg %p148
        $region50: #{tpu_custom_call.1} parent=35 // pred_check_branch
          %553 = sbr.rel (%p551) target = $region52
        $region51: #{tpu_custom_call.1} parent=35 // pred_region
          %s554 = smul.u32 2, %s27
          %s556 = ssub.s32 256, 256
          %557 = vsyncadd %s547, %s556
          %s558 = smul.addr %s554, 2
          %s559 = sadd.s32 %s26, %s558
          %s560 = smul.addr %s559, 128
          %s561 = scalar_lea.hbm %s4, %s560
          %s562 = sshll.u32 %s550, 4
          %s563 = int_to_ptr.vmem [resolvable:$true] %s562
          %568 = dma.vmem_to_hbm [thread:$0]  %s563, 256, %s561, %s547, 128, 256, 8
        $region52: #{tpu_custom_call.1} parent=35 // pred_fallthru
          _
      $region36: #{tpu_custom_call.1} parent=5 // pred_fallthru
        _
      %p569 = scmp.le.s32.totalorder 2, %s17
      // Predicated region
      $region53: #{tpu_custom_call.1} parent=5 // pred_check
        %p570 = pneg %p569
      $region54: #{tpu_custom_call.1} parent=5 // pred_check_branch
        %572 = sbr.rel (%p570) target = $region56
      $region55: #{tpu_custom_call.1} parent=5 // pred_region
        %s573 = ssub.s32 %s17, 2
        // Predicated region
        $region57: #{tpu_custom_call.1} parent=55 // pred_check
          %p574 = pneg %p154
        $region58: #{tpu_custom_call.1} parent=55 // pred_check_branch
          %576 = sbr.rel (%p574) target = $region60
        $region59: #{tpu_custom_call.1} parent=55 // pred_region
          %s577 = sand.u32 %s139, 1
          %s578 = scalar_lea.sflag [#allocation4], %s577
          %s579 = sand.u32 %s139, 1
          %s580 = smul.addr %s579, 16
          %s581 = scalar_lea.vmem [#allocation8], %s580
          %582 = dma.done %s578, 256
        $region60: #{tpu_custom_call.1} parent=55 // pred_fallthru
          _
      $region56: #{tpu_custom_call.1} parent=5 // pred_fallthru
        _
    $region6: #{tpu_custom_call.1} parent=1 // loop_footer
      %s21 = sadd.s32 1, %s17
    $region7: #{tpu_custom_call.1} parent=1 // loop_footer_branch
      %16 = sbr.rel target = $region3
    $region8: #{tpu_custom_call.1} parent=1 // loop_exit
      _
    %583 = vsyncpa [#allocation3], 1
    %s584 = scalar_lea.sflag [#allocation3], 1
    %585 = vsyncpa %s584, 1
    %586 = vsyncpa [#allocation6], 1
    %587 = vsyncpa [#allocation4], 1
    %s588 = scalar_lea.sflag [#allocation4], 1
    %589 = vsyncpa %s588, 1

</llo_original>
